<compile_context>
chip_gen: v6e
topology: v6e:2x2x1
jax: 0.10.0
libtpu: 0.0.40
codegen_flags: <defaults>
</compile_context>

<pallas_src>
import jax
import jax.numpy as jnp
from jax.experimental import pallas as pl
from jax.experimental.pallas import tpu as pltpu

LANE = 128  # vreg lane width; packed output axis is padded to a multiple of this.


def _rnn_cell_kernel(x_ref, h_ref, wx_ref, wh_ref, b_ref, out_ref):
    """Single RNN step. Fused GEMM (concat + both Linears) -> packed lane-dense store."""
    acc = jnp.dot(x_ref[...], wx_ref[...], preferred_element_type=jnp.float32)
    acc = acc + jnp.dot(h_ref[...], wh_ref[...], preferred_element_type=jnp.float32)
    out_ref[...] = (acc + b_ref[...]).astype(out_ref.dtype)


def _rnn_seq_kernel(x_ref, h0_ref, wx_ref, wh_ref, b_ref, out_ref, h_sc):
    """Full recurrence fused in one kernel; grid axis 0 = timestep (sequential).

    h_sc carries the packed (B, n_pad) activation slab [hidden | output | pad];
    wh_ref is (n_pad, n_pad) with zero rows >= H, so the padded/output lanes
    of the carry contribute nothing and every VMEM access stays unmasked.
    """
    t = pl.program_id(0)

    @pl.when(t == 0)
    def _():
        h_sc[...] = h0_ref[...].astype(jnp.float32)   # hidden carry lives in VMEM

    acc = jnp.dot(x_ref[0], wx_ref[...], preferred_element_type=jnp.float32)
    acc = acc + jnp.dot(h_sc[...], wh_ref[...], preferred_element_type=jnp.float32)
    acc = acc + b_ref[...]                            # packed [hidden | output | pad]
    h_sc[...] = acc                                   # lane-dense carry, no HBM trip
    out_ref[0] = acc.astype(out_ref.dtype)            # one unmasked (B, n_pad) store


def prepare_params(params, input_size):
    """One-time weight packing (hoisted out of the forward path)."""
    w_i2h, b_i2h = params["w_i2h"], params["b_i2h"]
    w_i2o, b_i2o = params["w_i2o"], params["b_i2o"]
    hidden_size, num_classes = w_i2h.shape[0], w_i2o.shape[0]
    n = hidden_size + num_classes
    n_pad = pl.cdiv(n, LANE) * LANE

    w_all = jnp.concatenate([w_i2h.T, w_i2o.T], axis=1)        # (I+H, H+C)
    w_all = jnp.pad(w_all, ((0, 0), (0, n_pad - n)))           # lane-dense pad
    b_all = jnp.concatenate([b_i2h, b_i2o])
    b_all = jnp.pad(b_all, (0, n_pad - n)).reshape(1, n_pad)

    wx = w_all[:input_size, :]         # (I, N_pad): multiplies the input rows
    wh = w_all[input_size:, :]         # (H, N_pad): multiplies the hidden rows
    # Row-padded recurrent weight for the fused-sequence kernel: rows >= H are
    # zero so the packed output / pad lanes of the carried slab are ignored.
    wh_full = jnp.pad(wh, ((0, n_pad - hidden_size), (0, 0)))  # (N_pad, N_pad)

    return {
        "wx": wx,
        "wh": wh,
        "wh_full": wh_full,
        "b": b_all,                    # (1, N_pad)
        "hidden_size": hidden_size,
        "num_classes": num_classes,
        "n_pad": n_pad,
    }


def basic_rnn_forward(input_tensor, hidden_tensor, prepared):
    """Single-step forward matching basicRNN.forward. Returns (output, new_hidden)."""
    B = input_tensor.shape[0]
    H, C, n_pad = prepared["hidden_size"], prepared["num_classes"], prepared["n_pad"]

    # No grid: whole (tiny) arrays are mapped straight into VMEM.
    packed = pl.pallas_call(
        _rnn_cell_kernel,
        out_shape=jax.ShapeDtypeStruct((B, n_pad), input_tensor.dtype),
    )(input_tensor, hidden_tensor, prepared["wx"], prepared["wh"], prepared["b"])

    return packed[:, H:H + C], packed[:, :H]


def basic_rnn_sequence(inputs, h0, prepared):
    """Runs the recurrence for all T steps inside ONE pallas_call.

    inputs: (T, B, I); h0: (B, H). Returns (outputs (T, B, C), final_hidden (B, H)).
    Semantically identical to calling basic_rnn_forward T times.
    """
    T, B, I = inputs.shape
    H, C, n_pad = prepared["hidden_size"], prepared["num_classes"], prepared["n_pad"]

    # One-time pad of the initial hidden into the packed lane layout (outside
    # the T-step loop); read by the kernel only at t == 0.
    h0_packed = jnp.pad(h0, ((0, 0), (0, n_pad - H)))

    grid_spec = pltpu.PrefetchScalarGridSpec(
        num_scalar_prefetch=0,
        grid=(T,),
        in_specs=[
            pl.BlockSpec((1, B, I), lambda t: (t, 0, 0)),        # x_t streamed per step
            pl.BlockSpec((B, n_pad), lambda t: (0, 0)),          # h0 (read only at t==0)
            pl.BlockSpec((I, n_pad), lambda t: (0, 0)),          # weights: VMEM-resident
            pl.BlockSpec((n_pad, n_pad), lambda t: (0, 0)),
            pl.BlockSpec((1, n_pad), lambda t: (0, 0)),
        ],
        out_specs=pl.BlockSpec((1, B, n_pad), lambda t: (t, 0, 0)),
        scratch_shapes=[pltpu.VMEM((B, n_pad), jnp.float32)],    # packed carry slab
    )

    slab = pl.pallas_call(
        _rnn_seq_kernel,
        out_shape=jax.ShapeDtypeStruct((T, B, n_pad), inputs.dtype),
        grid_spec=grid_spec,
        compiler_params=pltpu.CompilerParams(
            dimension_semantics=("arbitrary",)),                 # recurrence => sequential
    )(inputs, h0_packed, prepared["wx"], prepared["wh_full"], prepared["b"])

    outputs = slab[:, :, H:H + C]
    final_hidden = slab[-1, :, :H]
    return outputs, final_hidden


def init_params(key, input_size, hidden_size, num_classes, dtype=jnp.float32):
    """Deterministic init mimicking nn.Linear default U[-1/sqrt(fan_in), 1/sqrt(fan_in)]."""
    d = input_size + hidden_size
    k1, k2, k3, k4 = jax.random.split(key, 4)
    bound = 1.0 / jnp.sqrt(jnp.float32(d))
    return {
        "w_i2h": jax.random.uniform(k1, (hidden_size, d), dtype, -bound, bound),
        "b_i2h": jax.random.uniform(k2, (hidden_size,), dtype, -bound, bound),
        "w_i2o": jax.random.uniform(k3, (num_classes, d), dtype, -bound, bound),
        "b_i2o": jax.random.uniform(k4, (num_classes,), dtype, -bound, bound),
    }


if __name__ == "__main__":
    input_size, hidden_size, num_classes = 16, 32, 8
    batch, seq_len = 2, 8

    key = jax.random.PRNGKey(0)
    kp, kx, kh, ks = jax.random.split(key, 4)

    params = init_params(kp, input_size, hidden_size, num_classes)
    prepared = prepare_params(params, input_size)       # packed once, reused

    x = jax.random.normal(kx, (batch, input_size), jnp.float32)
    h = jax.random.normal(kh, (batch, hidden_size), jnp.float32)
    xs = jax.random.normal(ks, (seq_len, batch, input_size), jnp.float32)

    hp = jax.lax.Precision.HIGHEST

    # --- single step (matches basicRNN.forward) ---
    output, hidden = basic_rnn_forward(x, h, prepared)
    jax.block_until_ready((output, hidden))

    comb = jnp.concatenate([x, h], axis=1)
    out_ref = jnp.dot(comb, params["w_i2o"].T, precision=hp) + params["b_i2o"]
    hid_ref = jnp.dot(comb, params["w_i2h"].T, precision=hp) + params["b_i2h"]
    assert jnp.allclose(output, out_ref, atol=1e-4, rtol=1e-4), "cell output mismatch"
    assert jnp.allclose(hidden, hid_ref, atol=1e-4, rtol=1e-4), "cell hidden mismatch"

    # --- full recurrence fused into one kernel ---
    outs, h_final = basic_rnn_sequence(xs, h, prepared)
    jax.block_until_ready((outs, h_final))

    h_r = h
    outs_ref = []
    for t in range(seq_len):
        c = jnp.concatenate([xs[t], h_r], axis=1)
        outs_ref.append(jnp.dot(c, params["w_i2o"].T, precision=hp) + params["b_i2o"])
        h_r = jnp.dot(c, params["w_i2h"].T, precision=hp) + params["b_i2h"]
    outs_ref = jnp.stack(outs_ref)
    assert jnp.allclose(outs, outs_ref, atol=1e-4, rtol=1e-4), "seq output mismatch"
    assert jnp.allclose(h_final, h_r, atol=1e-4, rtol=1e-4), "seq hidden mismatch"

    print("KERNEL_OK")
</pallas_src>

<mosaic_0001>
module attributes {stable_mosaic.version = 11 : i64} {
  func.func @_rnn_cell_kernel(%arg0: memref<2x16xf32, #tpu.memory_space<vmem>>, %arg1: memref<2x32xf32, #tpu.memory_space<vmem>>, %arg2: memref<16x128xf32, #tpu.memory_space<vmem>>, %arg3: memref<32x128xf32, #tpu.memory_space<vmem>>, %arg4: memref<1x128xf32, #tpu.memory_space<vmem>>, %arg5: memref<2x128xf32, #tpu.memory_space<vmem>>) attributes {dimension_semantics = [], scalar_prefetch = 0 : i64, scratch_operands = 0 : i64, tpu.core_type = #tpu.core_type<tc>} {
    %c0 = arith.constant 0 : index
    %c0_0 = arith.constant 0 : index
    %0 = vector.load %arg0[%c0, %c0_0] : memref<2x16xf32, #tpu.memory_space<vmem>>, vector<2x16xf32>
    %c0_1 = arith.constant 0 : index
    %c0_2 = arith.constant 0 : index
    %1 = vector.load %arg2[%c0_1, %c0_2] : memref<16x128xf32, #tpu.memory_space<vmem>>, vector<16x128xf32>
    %cst = arith.constant dense<0.000000e+00> : vector<2x128xf32>
    %2 = tpu.matmul %0, %1, %cst {dimension_numbers = #tpu.dot_dimension_numbers<[1], [0], [0], [1], [0, 0, 1, 1], [], []>} : vector<2x16xf32>, vector<16x128xf32>, vector<2x128xf32> -> vector<2x128xf32>
    %c0_3 = arith.constant 0 : index
    %c0_4 = arith.constant 0 : index
    %3 = vector.load %arg1[%c0_3, %c0_4] : memref<2x32xf32, #tpu.memory_space<vmem>>, vector<2x32xf32>
    %c0_5 = arith.constant 0 : index
    %c0_6 = arith.constant 0 : index
    %4 = vector.load %arg3[%c0_5, %c0_6] : memref<32x128xf32, #tpu.memory_space<vmem>>, vector<32x128xf32>
    %cst_7 = arith.constant dense<0.000000e+00> : vector<2x128xf32>
    %5 = tpu.matmul %3, %4, %cst_7 {dimension_numbers = #tpu.dot_dimension_numbers<[1], [0], [0], [1], [0, 0, 1, 1], [], []>} : vector<2x32xf32>, vector<32x128xf32>, vector<2x128xf32> -> vector<2x128xf32>
    %6 = arith.addf %2, %5 : vector<2x128xf32>
    %c0_8 = arith.constant 0 : index
    %c0_9 = arith.constant 0 : index
    %7 = vector.load %arg4[%c0_8, %c0_9] : memref<1x128xf32, #tpu.memory_space<vmem>>, vector<1x128xf32>
    %8 = vector.broadcast %7 : vector<1x128xf32> to vector<2x128xf32>
    %9 = arith.addf %6, %8 : vector<2x128xf32>
    %c0_10 = arith.constant 0 : index
    %c0_11 = arith.constant 0 : index
    %10 = vector.load %arg5[%c0_10, %c0_11] : memref<2x128xf32, #tpu.memory_space<vmem>>, vector<2x128xf32>
    tpu.vector_store %arg5[%c0_10, %c0_11], %9 {strides = array<i32>} : memref<2x128xf32, #tpu.memory_space<vmem>>, vector<2x128xf32>,
    return
  }
}

</mosaic_0001>

<llo_original>
// kernel: tpu_custom_call.1
$region0: #{tpu_custom_call.1}
  #allocation0 [shape = 'u32[]', space=smem, size = 0x4, offset = 0x4, fixed_abs, tag = 'smem constant byte address 0x4 - core index']
  #allocation1 [shape = 'u32[144,128]{1,0:T(1,128)}', space=vmem, size = 0x12000, scoped, tag = 'internal scratch']
  %s0 = inlined_call_operand.hbm [shape: f32[2,16], index: 0, kind: input, shape index: {}]
  %s1 = inlined_call_operand.hbm [shape: f32[2,32], index: 1, kind: input, shape index: {}]
  %s2 = inlined_call_operand.hbm [shape: f32[16,128], index: 2, kind: input, shape index: {}]
  %s3 = inlined_call_operand.hbm [shape: f32[32,128], index: 3, kind: input, shape index: {}]
  %s4 = inlined_call_operand.vmem [shape: f32[1,128], index: 4, kind: input, shape index: {}]
  %s5 = inlined_call_operand.hbm [shape: f32[2,128], index: 5, kind: output, shape index: {}]
  %s6 = sld [smem:[#allocation0]]
  $region46: #{tpu_custom_call.1} parent=0
    _
  %s8 = ssub.s32 1, %s6
  %s9 = scalar_select 0, %s8, %s6
  $region1: #{tpu_custom_call.1} parent=0
    #allocation2 [shape = 'u8[1024]{0}', space=vmem, size = 0x400, scoped, tag = 'input window, operand 0, single buffered']
    #allocation3 [shape = 's32[1]{0}', space=sflag, size = 0x4, scoped, tag = 'scoped memory for tpu_custom_call.1']
    #allocation4 [shape = 's32[1]{0}', space=sflag, size = 0x4, scoped, tag = 'scoped memory for tpu_custom_call.1']
    #allocation5 [shape = 'u8[1024]{0}', space=vmem, size = 0x400, scoped, tag = 'input window, operand 1, single buffered']
    #allocation6 [shape = 's32[1]{0}', space=sflag, size = 0x4, scoped, tag = 'scoped memory for tpu_custom_call.1']
    #allocation7 [shape = 'u8[8192]{0}', space=vmem, size = 0x2000, scoped, tag = 'input window, operand 2, single buffered']
    #allocation8 [shape = 'u8[16384]{0}', space=vmem, size = 0x4000, scoped, tag = 'input window, operand 3, single buffered']
    #allocation9 [shape = 's32[1]{0}', space=sflag, size = 0x4, scoped, tag = 'scoped memory for tpu_custom_call.1']
    #allocation10 [shape = 'u8[1024]{0}', space=vmem, size = 0x400, scoped, tag = 'output window, operand 0, single buffered']
    %10 = vsyncpa [#allocation3], 0
    %11 = vsyncpa [#allocation6], 0
    %12 = vsyncpa [#allocation9], 0
    %13 = vsyncpa [#allocation4], 0
    // Predicated region
    $region2: #{tpu_custom_call.1} parent=1 // pred_check
      _
    $region3: #{tpu_custom_call.1} parent=1 // pred_check_branch
      %15 = sbr.rel (0) target = $region5
    $region4: #{tpu_custom_call.1} parent=1 // pred_region
      %s17 = ssub.s32 32, 32
      %18 = vsyncadd [#allocation3], %s17
      %s20 = sshll.u32 [#allocation2], 4
      %s21 = int_to_ptr.vmem [resolvable:$true] %s20
      %23 = dma.hbm_to_vmem [thread:$0]  %s0, 32, %s21, [#allocation3]
    $region5: #{tpu_custom_call.1} parent=1 // pred_fallthru
      _
    // Predicated region
    $region6: #{tpu_custom_call.1} parent=1 // pred_check
      _
    $region7: #{tpu_custom_call.1} parent=1 // pred_check_branch
      %25 = sbr.rel (0) target = $region9
    $region8: #{tpu_custom_call.1} parent=1 // pred_region
      %s27 = ssub.s32 32, 32
      %28 = vsyncadd [#allocation6], %s27
      %s30 = sshll.u32 [#allocation5], 4
      %s31 = int_to_ptr.vmem [resolvable:$true] %s30
      %33 = dma.hbm_to_vmem [thread:$0]  %s1, 32, %s31, [#allocation6]
    $region9: #{tpu_custom_call.1} parent=1 // pred_fallthru
      _
    // Predicated region
    $region10: #{tpu_custom_call.1} parent=1 // pred_check
      _
    $region11: #{tpu_custom_call.1} parent=1 // pred_check_branch
      %35 = sbr.rel (0) target = $region13
    $region12: #{tpu_custom_call.1} parent=1 // pred_region
      %s37 = ssub.s32 256, 256
      %38 = vsyncadd [#allocation6], %s37
      %s39 = sshll.u32 [#allocation7], 4
      %s40 = int_to_ptr.vmem [resolvable:$true] %s39
      %45 = dma.hbm_to_vmem [thread:$0]  %s2, 256, %s40, [#allocation6], 128, 128, 8
    $region13: #{tpu_custom_call.1} parent=1 // pred_fallthru
      _
    // Predicated region
    $region14: #{tpu_custom_call.1} parent=1 // pred_check
      _
    $region15: #{tpu_custom_call.1} parent=1 // pred_check_branch
      %47 = sbr.rel (0) target = $region17
    $region16: #{tpu_custom_call.1} parent=1 // pred_region
      %s49 = ssub.s32 512, 512
      %50 = vsyncadd [#allocation9], %s49
      %s51 = sshll.u32 [#allocation8], 4
      %s52 = int_to_ptr.vmem [resolvable:$true] %s51
      %57 = dma.hbm_to_vmem [thread:$0]  %s3, 512, %s52, [#allocation9], 128, 128, 8
    $region17: #{tpu_custom_call.1} parent=1 // pred_fallthru
      _
    // Predicated region
    $region18: #{tpu_custom_call.1} parent=1 // pred_check
      _
    $region19: #{tpu_custom_call.1} parent=1 // pred_check_branch
      %59 = sbr.rel (0) target = $region21
    $region20: #{tpu_custom_call.1} parent=1 // pred_region
      _
    $region21: #{tpu_custom_call.1} parent=1 // pred_fallthru
      _
    // Predicated region
    $region22: #{tpu_custom_call.1} parent=1 // pred_check
      _
    $region23: #{tpu_custom_call.1} parent=1 // pred_check_branch
      %61 = sbr.rel (0) target = $region25
    $region24: #{tpu_custom_call.1} parent=1 // pred_region
      %62 = dma.done [#allocation3], 32
    $region25: #{tpu_custom_call.1} parent=1 // pred_fallthru
      _
    // Predicated region
    $region26: #{tpu_custom_call.1} parent=1 // pred_check
      _
    $region27: #{tpu_custom_call.1} parent=1 // pred_check_branch
      %64 = sbr.rel (0) target = $region29
    $region28: #{tpu_custom_call.1} parent=1 // pred_region
      %65 = dma.done [#allocation6], 32
    $region29: #{tpu_custom_call.1} parent=1 // pred_fallthru
      _
    // Predicated region
    $region30: #{tpu_custom_call.1} parent=1 // pred_check
      _
    $region31: #{tpu_custom_call.1} parent=1 // pred_check_branch
      %67 = sbr.rel (0) target = $region33
    $region32: #{tpu_custom_call.1} parent=1 // pred_region
      %68 = dma.done [#allocation6], 256
    $region33: #{tpu_custom_call.1} parent=1 // pred_fallthru
      _
    // Predicated region
    $region34: #{tpu_custom_call.1} parent=1 // pred_check
      _
    $region35: #{tpu_custom_call.1} parent=1 // pred_check_branch
      %70 = sbr.rel (0) target = $region37
    $region36: #{tpu_custom_call.1} parent=1 // pred_region
      %71 = dma.done [#allocation9], 512
    $region37: #{tpu_custom_call.1} parent=1 // pred_fallthru
      _
    %v72 = vld [vmem:[#allocation2] sm:$0x3]
    %v73 = vld [vmem:[#allocation7] sm:$0xff]
    %v74 = vld [vmem:[#allocation7 + $0x8] sm:$0xff]
    %v75 = vld [vmem:[#allocation5] sm:$0x3]
    %v76 = vld [vmem:[#allocation8] sm:$0xff]
    %v77 = vld [vmem:[#allocation8 + $0x8] sm:$0xff]
    %v78 = vld [vmem:[#allocation8 + $0x10] sm:$0xff]
    %v79 = vld [vmem:[#allocation8 + $0x18] sm:$0xff]
    %vm80 = vcmask 261120
    %v82 = vsel %vm80, %v75, 0
    %84 = vmatprep.subr.mxu0 0.0
    %85 = vmatpush1.msra.mxu0 0.0
    %86 = vmatprep.subr.mxu0 0.0
    %87 = vmatpush1.msra.mxu0 0.0
    %88 = vmatprep.subr.mxu0 0.0
    %89 = vmatpush1.msra.mxu0 0.0
    %90 = vmatprep.subr.mxu0 0.0
    %91 = vmatpush1.msra.mxu0 0.0
    %92 = vmatprep.subr.mxu0 0.0
    %93 = vmatpush1.msra.mxu0 0.0
    %94 = vmatprep.subr.mxu0 0.0
    %95 = vmatpush1.msra.mxu0 0.0
    %96 = vmatprep.subr.mxu0 0.0
    %97 = vmatpush1.msra.mxu0 0.0
    %98 = vmatprep.subr.mxu0 0.0
    %99 = vmatpush1.msra.mxu0 0.0
    %100 = vmatprep.subr.mxu0 0.0
    %101 = vmatpush1.msra.mxu0 0.0
    %102 = vmatprep.subr.mxu0 0.0
    %103 = vmatpush1.msra.mxu0 0.0
    %104 = vmatprep.subr.mxu0 0.0
    %105 = vmatpush1.msra.mxu0 0.0
    %106 = vmatprep.subr.mxu0 0.0
    %107 = vmatpush1.msra.mxu0 0.0
    %108 = vmatprep.subr.mxu0 0.0
    %109 = vmatpush1.msra.mxu0 %v79
    %110 = vmatprep.subr.mxu0 0.0
    %111 = vmatpush1.msra.mxu0 %v78
    %112 = vmatprep.subr.mxu0 0.0
    %113 = vmatpush1.msra.mxu0 %v77
    %114 = vmatprep.subr.mxu0 0.0
    %115 = vmatpush1.msra.mxu0 %v76
    %116 = vmatprep.subr.mxu0 0.0
    %117 = vmatpush2.msra.mxu0 0.0
    %118 = vmatprep.subr.mxu0 0.0
    %119 = vmatpush2.msra.mxu0 0.0
    %120 = vmatprep.subr.mxu0 0.0
    %121 = vmatpush2.msra.mxu0 0.0
    %122 = vmatprep.subr.mxu0 0.0
    %123 = vmatpush2.msra.mxu0 0.0
    %124 = vmatprep.subr.mxu0 0.0
    %125 = vmatpush2.msra.mxu0 0.0
    %126 = vmatprep.subr.mxu0 0.0
    %127 = vmatpush2.msra.mxu0 0.0
    %128 = vmatprep.subr.mxu0 0.0
    %129 = vmatpush2.msra.mxu0 0.0
    %130 = vmatprep.subr.mxu0 0.0
    %131 = vmatpush2.msra.mxu0 0.0
    %132 = vmatprep.subr.mxu0 0.0
    %133 = vmatpush2.msra.mxu0 0.0
    %134 = vmatprep.subr.mxu0 0.0
    %135 = vmatpush2.msra.mxu0 0.0
    %136 = vmatprep.subr.mxu0 0.0
    %137 = vmatpush2.msra.mxu0 0.0
    %138 = vmatprep.subr.mxu0 0.0
    %139 = vmatpush2.msra.mxu0 0.0
    %140 = vmatprep.subr.mxu0 0.0
    %141 = vmatpush2.msra.mxu0 0.0
    %142 = vmatprep.subr.mxu0 0.0
    %143 = vmatpush2.msra.mxu0 0.0
    %144 = vmatprep.subr.mxu0 0.0
    %145 = vmatpush2.msra.mxu0 0.0
    %146 = vmatprep.subr.mxu0 0.0
    %147 = vmatpush2.msra.mxu0 0.0
    %148 = vmatprep.mubr.f32.mxu0 0.0
    %149 = vmatmul.mubr.f32.gmra.mxu0 %v82
    %v150 = vpop.f32.mrf.mxu0
    %v151 = vadd.f32 0.0, %v150
    %v152 = vpop.f32.mrf.mxu0
    %153 = vdwg.mxu0
    %vm154 = vcmask 130048
    %v156 = vsel %vm154, %v72, 0
    %158 = vmatprep.subr.mxu0 0.0
    %159 = vmatpush1.msra.mxu0 0.0
    %160 = vmatprep.subr.mxu0 0.0
    %161 = vmatpush1.msra.mxu0 0.0
    %162 = vmatprep.subr.mxu0 0.0
    %163 = vmatpush1.msra.mxu0 0.0
    %164 = vmatprep.subr.mxu0 0.0
    %165 = vmatpush1.msra.mxu0 0.0
    %166 = vmatprep.subr.mxu0 0.0
    %167 = vmatpush1.msra.mxu0 0.0
    %168 = vmatprep.subr.mxu0 0.0
    %169 = vmatpush1.msra.mxu0 0.0
    %170 = vmatprep.subr.mxu0 0.0
    %171 = vmatpush1.msra.mxu0 0.0
    %172 = vmatprep.subr.mxu0 0.0
    %173 = vmatpush1.msra.mxu0 0.0
    %174 = vmatprep.subr.mxu0 0.0
    %175 = vmatpush1.msra.mxu0 0.0
    %176 = vmatprep.subr.mxu0 0.0
    %177 = vmatpush1.msra.mxu0 0.0
    %178 = vmatprep.subr.mxu0 0.0
    %179 = vmatpush1.msra.mxu0 0.0
    %180 = vmatprep.subr.mxu0 0.0
    %181 = vmatpush1.msra.mxu0 0.0
    %182 = vmatprep.subr.mxu0 0.0
    %183 = vmatpush1.msra.mxu0 0.0
    %184 = vmatprep.subr.mxu0 0.0
    %185 = vmatpush1.msra.mxu0 0.0
    %186 = vmatprep.subr.mxu0 0.0
    %187 = vmatpush1.msra.mxu0 %v74
    %188 = vmatprep.subr.mxu0 0.0
    %189 = vmatpush1.msra.mxu0 %v73
    %190 = vmatprep.subr.mxu0 0.0
    %191 = vmatpush2.msra.mxu0 0.0
    %192 = vmatprep.subr.mxu0 0.0
    %193 = vmatpush2.msra.mxu0 0.0
    %194 = vmatprep.subr.mxu0 0.0
    %195 = vmatpush2.msra.mxu0 0.0
    %196 = vmatprep.subr.mxu0 0.0
    %197 = vmatpush2.msra.mxu0 0.0
    %198 = vmatprep.subr.mxu0 0.0
    %199 = vmatpush2.msra.mxu0 0.0
    %200 = vmatprep.subr.mxu0 0.0
    %201 = vmatpush2.msra.mxu0 0.0
    %202 = vmatprep.subr.mxu0 0.0
    %203 = vmatpush2.msra.mxu0 0.0
    %204 = vmatprep.subr.mxu0 0.0
    %205 = vmatpush2.msra.mxu0 0.0
    %206 = vmatprep.subr.mxu0 0.0
    %207 = vmatpush2.msra.mxu0 0.0
    %208 = vmatprep.subr.mxu0 0.0
    %209 = vmatpush2.msra.mxu0 0.0
    %210 = vmatprep.subr.mxu0 0.0
    %211 = vmatpush2.msra.mxu0 0.0
    %212 = vmatprep.subr.mxu0 0.0
    %213 = vmatpush2.msra.mxu0 0.0
    %214 = vmatprep.subr.mxu0 0.0
    %215 = vmatpush2.msra.mxu0 0.0
    %216 = vmatprep.subr.mxu0 0.0
    %217 = vmatpush2.msra.mxu0 0.0
    %218 = vmatprep.subr.mxu0 0.0
    %219 = vmatpush2.msra.mxu0 0.0
    %220 = vmatprep.subr.mxu0 0.0
    %221 = vmatpush2.msra.mxu0 0.0
    %222 = vmatprep.mubr.f32.mxu0 0.0
    %223 = vmatmul.mubr.f32.gmra.mxu0 %v156
    %v224 = vpop.f32.mrf.mxu0
    %v225 = vadd.f32 %v151, %v224
    %v226 = vpop.f32.mrf.mxu0
    %227 = vdwg.mxu0
    %v228 = vld [vmem:[%s4] sm:$0x1]
    %v230 = vlaneseq
    %v231 = vshrl.u32 %v230, 7
    %v232 = vsub.s32 0, %v231
    %v233 = vrot.slane %v228, %v232
    %v235 = vadd.f32 %v225, %v233
    %236 = vst [vmem:[#allocation10] sm:$0x3] %v235
    // Predicated region
    $region38: #{tpu_custom_call.1} parent=1 // pred_check
      _
    $region39: #{tpu_custom_call.1} parent=1 // pred_check_branch
      %238 = sbr.rel (0) target = $region41
    $region40: #{tpu_custom_call.1} parent=1 // pred_region
      %s240 = ssub.s32 32, 32
      %241 = vsyncadd [#allocation4], %s240
      %s243 = sshll.u32 [#allocation10], 4
      %s244 = int_to_ptr.vmem [resolvable:$true] %s243
      %246 = dma.vmem_to_hbm [thread:$0]  %s244, 32, %s5, [#allocation4]
    $region41: #{tpu_custom_call.1} parent=1 // pred_fallthru
      _
    // Predicated region
    $region42: #{tpu_custom_call.1} parent=1 // pred_check
      _
    $region43: #{tpu_custom_call.1} parent=1 // pred_check_branch
      %248 = sbr.rel (0) target = $region45
    $region44: #{tpu_custom_call.1} parent=1 // pred_region
      %249 = dma.done [#allocation4], 32
    $region45: #{tpu_custom_call.1} parent=1 // pred_fallthru
      _
    %250 = vsyncpa [#allocation3], 1
    %251 = vsyncpa [#allocation6], 1
    %252 = vsyncpa [#allocation9], 1
    %253 = vsyncpa [#allocation4], 1

</llo_original>
